<compile_context>
chip_gen: v6e
topology: v6e:2x2x1
jax: 0.10.0
libtpu: 0.0.40
codegen_flags: <defaults>
</compile_context>

<pallas_src>
import jax
import jax.numpy as jnp
from jax import lax
from jax.experimental import pallas as pl
from jax.experimental.pallas import tpu as pltpu

BN_EPS = 1e-5

# logical sizes
D_IN, D_H1, D_H2, D_OUT = 600, 10, 5, 2
# padded hidden sizes (one lane tile each); output stays at its true width (2)
P_H1, P_H2 = 128, 128

# Tile caps keep the double-buffered x stream inside v5e's 16 MiB default
# scoped VMEM (2048*600*4*2 ~ 9.8 MiB f32; 4096*600*2*2 ~ 9.4 MiB bf16),
# while amortizing the ~0.35 us per-grid-step overhead on v6e/v7x.
_MAX_TILE_B_F32 = 2048
_MAX_TILE_B_BF16 = 4096


# --------------------------- kernel ---------------------------
def _classification_net_kernel(x_ref, w1_ref, b1_ref, w2_ref, b2_ref,
                               w3_ref, b3_ref, o_ref):
    """fc1+ReLU -> fc2+ReLU -> (BN folded into) fc3, for one batch tile.

    All matmuls run on the bf16 MXU path; accumulation / bias / ReLU in f32.
    """
    x = x_ref[...].astype(jnp.bfloat16)                      # no-op if x is bf16

    h1 = jnp.dot(x, w1_ref[...], preferred_element_type=jnp.float32) + b1_ref[...]
    h1 = jnp.maximum(h1, 0.0)
    # dropout(p=0.1) in eval mode == identity

    h2 = jnp.dot(h1.astype(jnp.bfloat16), w2_ref[...],
                 preferred_element_type=jnp.float32) + b2_ref[...]
    h2 = jnp.maximum(h2, 0.0)
    # BatchNorm1d folded into fc3; dropout == identity

    o_ref[...] = (jnp.dot(h2.astype(jnp.bfloat16), w3_ref[...],
                          preferred_element_type=jnp.float32) + b3_ref[...])


# --------------------- parameter preparation ---------------------
def _pad2(a, rows, cols):
    out = jnp.zeros((rows, cols), a.dtype)
    return out.at[: a.shape[0], : a.shape[1]].set(a)


def prepare_params(params):
    """Fold BN into fc3, zero-pad to lane-friendly shapes, cast weights to bf16.
    Call ONCE (outside the per-forward hot path). Biases stay f32 (added to the
    f32 accumulators)."""
    w1, b1, w2, b2, gamma, beta, run_mean, run_var, w3, b3 = params

    scale = gamma * lax.rsqrt(run_var + BN_EPS)                 # (5,)
    w3f = w3 * scale[:, None]                                   # (5, 2)
    b3f = b3 + (beta - run_mean * scale) @ w3                   # (2,)

    w1p = _pad2(w1, D_IN, P_H1).astype(jnp.bfloat16)    # (600, 128) bf16
    b1p = _pad2(b1[None, :], 1, P_H1)                   # (1, 128)   f32
    w2p = _pad2(w2, P_H1, P_H2).astype(jnp.bfloat16)    # (128, 128) bf16
    b2p = _pad2(b2[None, :], 1, P_H2)                   # (1, 128)   f32
    w3p = _pad2(w3f, P_H2, D_OUT).astype(jnp.bfloat16)  # (128, 2)   bf16
    b3p = _pad2(b3f[None, :], 1, D_OUT)                 # (1, 2)     f32
    return (w1p, b1p, w2p, b2p, w3p, b3p)


# --------------------------- forward ---------------------------
def _compute_tile_b(batch, itemsize):
    """Pick the batch tile: >= 2 grid steps when B >= 16 (v7x megacore),
    rounded to a sublane multiple, capped so double-buffered x fits VMEM."""
    max_tile = _MAX_TILE_B_BF16 if itemsize <= 2 else _MAX_TILE_B_F32
    if batch < 16:
        return batch                       # single step; block == full array
    half = pl.cdiv(batch, 2)
    half = ((half + 7) // 8) * 8           # sublane-aligned
    return min(max_tile, half)


@jax.jit
def classification_net_forward(x, prepared):
    """x: (B, 600) bf16 (preferred; f32 accepted).  prepared: prepare_params().
    Returns (B, 2) float32 logits (eval mode)."""
    B = x.shape[0]
    w1p, b1p, w2p, b2p, w3p, b3p = prepared

    tile_b = _compute_tile_b(B, jnp.dtype(x.dtype).itemsize)
    nb = pl.cdiv(B, tile_b)

    x_spec = pl.BlockSpec((tile_b, D_IN), lambda i: (i, 0))
    o_spec = pl.BlockSpec((tile_b, D_OUT), lambda i: (i, 0))
    # weights / biases: resident across all batch tiles -> single buffer
    const = lambda shape: pl.BlockSpec(shape, lambda i: (0, 0),
                                       pipeline_mode=pl.Buffered(1))

    return pl.pallas_call(
        _classification_net_kernel,
        out_shape=jax.ShapeDtypeStruct((B, D_OUT), jnp.float32),
        grid=(nb,),
        in_specs=[
            x_spec,
            const((D_IN, P_H1)), const((1, P_H1)),
            const((P_H1, P_H2)), const((1, P_H2)),
            const((P_H2, D_OUT)), const((1, D_OUT)),
        ],
        out_specs=o_spec,
        compiler_params=pltpu.CompilerParams(
            dimension_semantics=("parallel",)),
    )(x, w1p, b1p, w2p, b2p, w3p, b3p)


# ----------------- deterministic parameter construction -----------------
def init_params(key):
    """nn.Linear default init; BN stats made non-trivial to exercise folding."""
    def linear(k, fan_in, fan_out):
        kw, kb = jax.random.split(k)
        bound = 1.0 / jnp.sqrt(fan_in)
        w = jax.random.uniform(kw, (fan_in, fan_out), jnp.float32, -bound, bound)
        b = jax.random.uniform(kb, (fan_out,), jnp.float32, -bound, bound)
        return w, b

    k1, k2, k3, k4, k5, k6, k7 = jax.random.split(key, 7)
    w1, b1 = linear(k1, D_IN, D_H1)
    w2, b2 = linear(k2, D_H1, D_H2)
    w3, b3 = linear(k3, D_H2, D_OUT)
    gamma    = jax.random.uniform(k4, (D_H2,), jnp.float32, 0.5, 1.5)
    beta     = 0.1 * jax.random.normal(k5, (D_H2,), jnp.float32)
    run_mean = 0.1 * jax.random.normal(k6, (D_H2,), jnp.float32)
    run_var  = jax.random.uniform(k7, (D_H2,), jnp.float32, 0.5, 1.5)
    return (w1, b1, w2, b2, gamma, beta, run_mean, run_var, w3, b3)


def reference_forward(x, params):
    """Pure-JAX f32 reference of the eval-mode PyTorch forward (unfolded BN)."""
    w1, b1, w2, b2, gamma, beta, run_mean, run_var, w3, b3 = params
    h = jnp.maximum(x @ w1 + b1, 0.0)
    h = jnp.maximum(h @ w2 + b2, 0.0)
    h = (h - run_mean) / jnp.sqrt(run_var + BN_EPS) * gamma + beta
    return h @ w3 + b3


if __name__ == "__main__":
    key = jax.random.PRNGKey(0)
    kp, kx = jax.random.split(key)

    params = init_params(kp)
    prepared = prepare_params(params)            # one-time pad + BN fold + bf16

    # x stored bf16 end-to-end (halves the dominant HBM read stream)
    x = jax.random.normal(kx, (8, D_IN), jnp.float32).astype(jnp.bfloat16)

    out = classification_net_forward(x, prepared)
    out = jax.block_until_ready(out)

    ref = reference_forward(x.astype(jnp.float32), params)
    assert out.shape == (8, D_OUT), out.shape
    # bf16 matmul path -> loosened tolerance vs f32 reference
    assert jnp.allclose(out, ref, atol=3e-2, rtol=3e-2), (out, ref)

    # multi-step grid + batch not a multiple of the tile (B=40 -> tile 24, 2 steps)
    x2 = jax.random.normal(jax.random.PRNGKey(1), (40, D_IN),
                           jnp.float32).astype(jnp.bfloat16)
    out2 = jax.block_until_ready(classification_net_forward(x2, prepared))
    ref2 = reference_forward(x2.astype(jnp.float32), params)
    assert out2.shape == (40, D_OUT), out2.shape
    assert jnp.allclose(out2, ref2, atol=3e-2, rtol=3e-2), (out2, ref2)

    print("KERNEL_OK")
</pallas_src>

<mosaic_0001>
module attributes {stable_mosaic.version = 11 : i64} {
  func.func @_classification_net_kernel(%arg0: i32, %arg1: memref<8x600xbf16, #tpu.memory_space<vmem>>, %arg2: memref<600x128xbf16, #tpu.memory_space<vmem>>, %arg3: memref<1x128xf32, #tpu.memory_space<vmem>>, %arg4: memref<128x128xbf16, #tpu.memory_space<vmem>>, %arg5: memref<1x128xf32, #tpu.memory_space<vmem>>, %arg6: memref<128x2xbf16, #tpu.memory_space<vmem>>, %arg7: memref<1x2xf32, #tpu.memory_space<vmem>>, %arg8: memref<8x2xf32, #tpu.memory_space<vmem>>) attributes {dimension_semantics = [#tpu.dimension_semantics<parallel>], iteration_bounds = array<i64: 1>, scalar_prefetch = 0 : i64, scratch_operands = 0 : i64, tpu.core_type = #tpu.core_type<tc>, window_params = [{transform_indices = @transform_0, window_bounds = array<i64: 8, 600>}, {pipeline_mode = #tpu.pipeline_mode<synchronous>, transform_indices = @transform_1, window_bounds = array<i64: 600, 128>}, {pipeline_mode = #tpu.pipeline_mode<synchronous>, transform_indices = @transform_2, window_bounds = array<i64: 1, 128>}, {pipeline_mode = #tpu.pipeline_mode<synchronous>, transform_indices = @transform_3, window_bounds = array<i64: 128, 128>}, {pipeline_mode = #tpu.pipeline_mode<synchronous>, transform_indices = @transform_4, window_bounds = array<i64: 1, 128>}, {pipeline_mode = #tpu.pipeline_mode<synchronous>, transform_indices = @transform_5, window_bounds = array<i64: 128, 2>}, {pipeline_mode = #tpu.pipeline_mode<synchronous>, transform_indices = @transform_6, window_bounds = array<i64: 1, 2>}, {transform_indices = @transform_7, window_bounds = array<i64: 8, 2>}]} {
    %c0 = arith.constant 0 : index
    %c0_0 = arith.constant 0 : index
    %0 = vector.load %arg1[%c0, %c0_0] : memref<8x600xbf16, #tpu.memory_space<vmem>>, vector<8x600xbf16>
    %c0_1 = arith.constant 0 : index
    %c0_2 = arith.constant 0 : index
    %1 = vector.load %arg2[%c0_1, %c0_2] : memref<600x128xbf16, #tpu.memory_space<vmem>>, vector<600x128xbf16>
    %cst = arith.constant dense<0.000000e+00> : vector<8x128xf32>
    %2 = tpu.matmul %0, %1, %cst {dimension_numbers = #tpu.dot_dimension_numbers<[1], [0], [0], [1], [0, 0, 1, 1], [], []>} : vector<8x600xbf16>, vector<600x128xbf16>, vector<8x128xf32> -> vector<8x128xf32>
    %c0_3 = arith.constant 0 : index
    %c0_4 = arith.constant 0 : index
    %3 = vector.load %arg3[%c0_3, %c0_4] : memref<1x128xf32, #tpu.memory_space<vmem>>, vector<1x128xf32>
    %4 = vector.broadcast %3 : vector<1x128xf32> to vector<8x128xf32>
    %5 = arith.addf %2, %4 : vector<8x128xf32>
    %cst_5 = arith.constant 0.000000e+00 : f32
    %6 = vector.broadcast %cst_5 : f32 to vector<8x128xf32>
    %7 = arith.maximumf %5, %6 : vector<8x128xf32>
    %8 = arith.truncf %7 : vector<8x128xf32> to vector<8x128xbf16>
    %c0_6 = arith.constant 0 : index
    %c0_7 = arith.constant 0 : index
    %9 = vector.load %arg4[%c0_6, %c0_7] : memref<128x128xbf16, #tpu.memory_space<vmem>>, vector<128x128xbf16>
    %cst_8 = arith.constant dense<0.000000e+00> : vector<8x128xf32>
    %10 = tpu.matmul %8, %9, %cst_8 {dimension_numbers = #tpu.dot_dimension_numbers<[1], [0], [0], [1], [0, 0, 1, 1], [], []>} : vector<8x128xbf16>, vector<128x128xbf16>, vector<8x128xf32> -> vector<8x128xf32>
    %c0_9 = arith.constant 0 : index
    %c0_10 = arith.constant 0 : index
    %11 = vector.load %arg5[%c0_9, %c0_10] : memref<1x128xf32, #tpu.memory_space<vmem>>, vector<1x128xf32>
    %12 = vector.broadcast %11 : vector<1x128xf32> to vector<8x128xf32>
    %13 = arith.addf %10, %12 : vector<8x128xf32>
    %cst_11 = arith.constant 0.000000e+00 : f32
    %14 = vector.broadcast %cst_11 : f32 to vector<8x128xf32>
    %15 = arith.maximumf %13, %14 : vector<8x128xf32>
    %16 = arith.truncf %15 : vector<8x128xf32> to vector<8x128xbf16>
    %c0_12 = arith.constant 0 : index
    %c0_13 = arith.constant 0 : index
    %17 = vector.load %arg6[%c0_12, %c0_13] : memref<128x2xbf16, #tpu.memory_space<vmem>>, vector<128x2xbf16>
    %cst_14 = arith.constant dense<0.000000e+00> : vector<8x2xf32>
    %18 = tpu.matmul %16, %17, %cst_14 {dimension_numbers = #tpu.dot_dimension_numbers<[1], [0], [0], [1], [0, 0, 1, 1], [], []>} : vector<8x128xbf16>, vector<128x2xbf16>, vector<8x2xf32> -> vector<8x2xf32>
    %c0_15 = arith.constant 0 : index
    %c0_16 = arith.constant 0 : index
    %19 = vector.load %arg7[%c0_15, %c0_16] : memref<1x2xf32, #tpu.memory_space<vmem>>, vector<1x2xf32>
    %20 = vector.broadcast %19 : vector<1x2xf32> to vector<8x2xf32>
    %21 = arith.addf %18, %20 : vector<8x2xf32>
    %c0_17 = arith.constant 0 : index
    %c0_18 = arith.constant 0 : index
    %22 = vector.load %arg8[%c0_17, %c0_18] : memref<8x2xf32, #tpu.memory_space<vmem>>, vector<8x2xf32>
    tpu.vector_store %arg8[%c0_17, %c0_18], %21 {strides = array<i32>} : memref<8x2xf32, #tpu.memory_space<vmem>>, vector<8x2xf32>,
    return
  }
  func.func @transform_0(%arg0: i32) -> (i32, i32) {
    %c0_i32 = arith.constant 0 : i32
    %c0_i32_0 = arith.constant 0 : i32
    return %arg0, %c0_i32 : i32, i32
  }
  func.func @transform_1(%arg0: i32) -> (i32, i32) {
    %c0_i32 = arith.constant 0 : i32
    %c0_i32_0 = arith.constant 0 : i32
    %c0_i32_1 = arith.constant 0 : i32
    return %c0_i32, %c0_i32_0 : i32, i32
  }
  func.func @transform_2(%arg0: i32) -> (i32, i32) {
    %c0_i32 = arith.constant 0 : i32
    %c0_i32_0 = arith.constant 0 : i32
    %c0_i32_1 = arith.constant 0 : i32
    return %c0_i32, %c0_i32_0 : i32, i32
  }
  func.func @transform_3(%arg0: i32) -> (i32, i32) {
    %c0_i32 = arith.constant 0 : i32
    %c0_i32_0 = arith.constant 0 : i32
    %c0_i32_1 = arith.constant 0 : i32
    return %c0_i32, %c0_i32_0 : i32, i32
  }
  func.func @transform_4(%arg0: i32) -> (i32, i32) {
    %c0_i32 = arith.constant 0 : i32
    %c0_i32_0 = arith.constant 0 : i32
    %c0_i32_1 = arith.constant 0 : i32
    return %c0_i32, %c0_i32_0 : i32, i32
  }
  func.func @transform_5(%arg0: i32) -> (i32, i32) {
    %c0_i32 = arith.constant 0 : i32
    %c0_i32_0 = arith.constant 0 : i32
    %c0_i32_1 = arith.constant 0 : i32
    return %c0_i32, %c0_i32_0 : i32, i32
  }
  func.func @transform_6(%arg0: i32) -> (i32, i32) {
    %c0_i32 = arith.constant 0 : i32
    %c0_i32_0 = arith.constant 0 : i32
    %c0_i32_1 = arith.constant 0 : i32
    return %c0_i32, %c0_i32_0 : i32, i32
  }
  func.func @transform_7(%arg0: i32) -> (i32, i32) {
    %c0_i32 = arith.constant 0 : i32
    %c0_i32_0 = arith.constant 0 : i32
    return %arg0, %c0_i32 : i32, i32
  }
}

</mosaic_0001>

<llo_original>
// kernel: classification_net_forward.1
$region0: #{classification_net_forward.1}
  #allocation0 [shape = 'u32[]', space=smem, size = 0x4, offset = 0x4, fixed_abs, tag = 'smem constant byte address 0x4 - core index']
  #allocation1 [shape = 'u32[144,128]{1,0:T(1,128)}', space=vmem, size = 0x12000, scoped, tag = 'internal scratch']
  %s0 = inlined_call_operand.hbm [shape: bf16[8,600], index: 0, kind: input, shape index: {}]
  %s1 = inlined_call_operand.hbm [shape: bf16[600,128], index: 1, kind: input, shape index: {}]
  %s2 = inlined_call_operand.vmem [shape: f32[1,128], index: 2, kind: input, shape index: {}]
  %s3 = inlined_call_operand.vmem [shape: bf16[128,128], index: 3, kind: input, shape index: {}]
  %s4 = inlined_call_operand.vmem [shape: f32[1,128], index: 4, kind: input, shape index: {}]
  %s5 = inlined_call_operand.vmem [shape: bf16[128,2], index: 5, kind: input, shape index: {}]
  %s6 = inlined_call_operand.vmem [shape: f32[1,2], index: 6, kind: input, shape index: {}]
  %s7 = inlined_call_operand.vmem [shape: f32[8,2], index: 7, kind: output, shape index: {}]
  %s8 = sld [smem:[#allocation0]]
  $region46: #{classification_net_forward.1} parent=0
    _
  %s10 = ssub.s32 1, %s8
  %s11 = scalar_select 0, %s10, %s8
  $region1: #{classification_net_forward.1} parent=0
    #allocation2 [shape = 'u8[10240]{0}', space=vmem, size = 0x2800, scoped, tag = 'input window, operand 0, single buffered']
    #allocation3 [shape = 's32[1]{0}', space=sflag, size = 0x4, scoped, tag = 'scoped memory for classification_net_forward.1']
    #allocation4 [shape = 'u8[153600]{0}', space=vmem, size = 0x25800, scoped, tag = 'input window, operand 1, single buffered']
    #allocation5 [shape = 's32[1]{0}', space=sflag, size = 0x4, scoped, tag = 'scoped memory for classification_net_forward.1']
    %12 = vsyncpa [#allocation3], 0
    %13 = vsyncpa [#allocation5], 0
    // Predicated region
    $region2: #{classification_net_forward.1} parent=1 // pred_check
      _
    $region3: #{classification_net_forward.1} parent=1 // pred_check_branch
      %15 = sbr.rel (0) target = $region5
    $region4: #{classification_net_forward.1} parent=1 // pred_region
      %s17 = ssub.s32 320, 320
      %18 = vsyncadd [#allocation3], %s17
      %s20 = sshll.u32 [#allocation2], 4
      %s21 = int_to_ptr.vmem [resolvable:$true] %s20
      %23 = dma.hbm_to_vmem [thread:$0]  %s0, 320, %s21, [#allocation3]
    $region5: #{classification_net_forward.1} parent=1 // pred_fallthru
      _
    // Predicated region
    $region6: #{classification_net_forward.1} parent=1 // pred_check
      _
    $region7: #{classification_net_forward.1} parent=1 // pred_check_branch
      %25 = sbr.rel (0) target = $region9
    $region8: #{classification_net_forward.1} parent=1 // pred_region
      %s27 = ssub.s32 4800, 4800
      %28 = vsyncadd [#allocation5], %s27
      %s29 = sshll.u32 [#allocation4], 4
      %s30 = int_to_ptr.vmem [resolvable:$true] %s29
      %35 = dma.hbm_to_vmem [thread:$0]  %s1, 4800, %s30, [#allocation5], 64, 64, 4
    $region9: #{classification_net_forward.1} parent=1 // pred_fallthru
      _
    // Predicated region
    $region10: #{classification_net_forward.1} parent=1 // pred_check
      _
    $region11: #{classification_net_forward.1} parent=1 // pred_check_branch
      %37 = sbr.rel (0) target = $region13
    $region12: #{classification_net_forward.1} parent=1 // pred_region
      _
    $region13: #{classification_net_forward.1} parent=1 // pred_fallthru
      _
    // Predicated region
    $region14: #{classification_net_forward.1} parent=1 // pred_check
      _
    $region15: #{classification_net_forward.1} parent=1 // pred_check_branch
      %39 = sbr.rel (0) target = $region17
    $region16: #{classification_net_forward.1} parent=1 // pred_region
      _
    $region17: #{classification_net_forward.1} parent=1 // pred_fallthru
      _
    // Predicated region
    $region18: #{classification_net_forward.1} parent=1 // pred_check
      _
    $region19: #{classification_net_forward.1} parent=1 // pred_check_branch
      %41 = sbr.rel (0) target = $region21
    $region20: #{classification_net_forward.1} parent=1 // pred_region
      _
    $region21: #{classification_net_forward.1} parent=1 // pred_fallthru
      _
    // Predicated region
    $region22: #{classification_net_forward.1} parent=1 // pred_check
      _
    $region23: #{classification_net_forward.1} parent=1 // pred_check_branch
      %43 = sbr.rel (0) target = $region25
    $region24: #{classification_net_forward.1} parent=1 // pred_region
      _
    $region25: #{classification_net_forward.1} parent=1 // pred_fallthru
      _
    // Predicated region
    $region26: #{classification_net_forward.1} parent=1 // pred_check
      _
    $region27: #{classification_net_forward.1} parent=1 // pred_check_branch
      %45 = sbr.rel (0) target = $region29
    $region28: #{classification_net_forward.1} parent=1 // pred_region
      _
    $region29: #{classification_net_forward.1} parent=1 // pred_fallthru
      _
    // Predicated region
    $region30: #{classification_net_forward.1} parent=1 // pred_check
      _
    $region31: #{classification_net_forward.1} parent=1 // pred_check_branch
      %47 = sbr.rel (0) target = $region33
    $region32: #{classification_net_forward.1} parent=1 // pred_region
      %48 = dma.done [#allocation3], 320
    $region33: #{classification_net_forward.1} parent=1 // pred_fallthru
      _
    // Predicated region
    $region34: #{classification_net_forward.1} parent=1 // pred_check
      _
    $region35: #{classification_net_forward.1} parent=1 // pred_check_branch
      %50 = sbr.rel (0) target = $region37
    $region36: #{classification_net_forward.1} parent=1 // pred_region
      %51 = dma.done [#allocation5], 4800
    $region37: #{classification_net_forward.1} parent=1 // pred_fallthru
      _
    %v53 = vld [vmem:[#allocation2] sm:$0xff]
    %v54 = vld [vmem:[#allocation2 + $0x8] sm:$0xff]
    %v55 = vld [vmem:[#allocation2 + $0x10] sm:$0xf]
    %v56 = vld [vmem:[#allocation4] sm:$0xf]
    %v57 = vld [vmem:[#allocation4 + $0x4] sm:$0xf]
    %v58 = vld [vmem:[#allocation4 + $0x8] sm:$0xf]
    %v59 = vld [vmem:[#allocation4 + $0xc] sm:$0xf]
    %v60 = vld [vmem:[#allocation4 + $0x10] sm:$0xf]
    %v61 = vld [vmem:[#allocation4 + $0x14] sm:$0xf]
    %v62 = vld [vmem:[#allocation4 + $0x18] sm:$0xf]
    %v63 = vld [vmem:[#allocation4 + $0x1c] sm:$0xf]
    %v64 = vld [vmem:[#allocation4 + $0x20] sm:$0xf]
    %v65 = vld [vmem:[#allocation4 + $0x24] sm:$0xf]
    %v66 = vld [vmem:[#allocation4 + $0x28] sm:$0xf]
    %v67 = vld [vmem:[#allocation4 + $0x2c] sm:$0xf]
    %v68 = vld [vmem:[#allocation4 + $0x30] sm:$0xf]
    %v69 = vld [vmem:[#allocation4 + $0x34] sm:$0xf]
    %v70 = vld [vmem:[#allocation4 + $0x38] sm:$0xf]
    %v71 = vld [vmem:[#allocation4 + $0x3c] sm:$0xf]
    %v72 = vld [vmem:[#allocation4 + $0x40] sm:$0xf]
    %v73 = vld [vmem:[#allocation4 + $0x44] sm:$0xf]
    %v74 = vld [vmem:[#allocation4 + $0x48] sm:$0xf]
    %v75 = vld [vmem:[#allocation4 + $0x4c] sm:$0xf]
    %v76 = vld [vmem:[#allocation4 + $0x50] sm:$0xf]
    %v77 = vld [vmem:[#allocation4 + $0x54] sm:$0xf]
    %v78 = vld [vmem:[#allocation4 + $0x58] sm:$0xf]
    %v79 = vld [vmem:[#allocation4 + $0x5c] sm:$0xf]
    %v80 = vld [vmem:[#allocation4 + $0x60] sm:$0xf]
    %v81 = vld [vmem:[#allocation4 + $0x64] sm:$0xf]
    %v82 = vld [vmem:[#allocation4 + $0x68] sm:$0xf]
    %v83 = vld [vmem:[#allocation4 + $0x6c] sm:$0xf]
    %v84 = vld [vmem:[#allocation4 + $0x70] sm:$0xf]
    %v85 = vld [vmem:[#allocation4 + $0x74] sm:$0xf]
    %v86 = vld [vmem:[#allocation4 + $0x78] sm:$0xf]
    %v87 = vld [vmem:[#allocation4 + $0x7c] sm:$0xf]
    %v88 = vld [vmem:[#allocation4 + $0x80] sm:$0xf]
    %v89 = vld [vmem:[#allocation4 + $0x84] sm:$0xf]
    %v90 = vld [vmem:[#allocation4 + $0x88] sm:$0xf]
    %v91 = vld [vmem:[#allocation4 + $0x8c] sm:$0xf]
    %v92 = vld [vmem:[#allocation4 + $0x90] sm:$0xf]
    %v93 = vld [vmem:[#allocation4 + $0x94] sm:$0xf]
    %v94 = vld [vmem:[#allocation4 + $0x98] sm:$0xf]
    %v95 = vld [vmem:[#allocation4 + $0x9c] sm:$0xf]
    %v96 = vld [vmem:[#allocation4 + $0xa0] sm:$0xf]
    %v97 = vld [vmem:[#allocation4 + $0xa4] sm:$0xf]
    %v98 = vld [vmem:[#allocation4 + $0xa8] sm:$0xf]
    %v99 = vld [vmem:[#allocation4 + $0xac] sm:$0xf]
    %v100 = vld [vmem:[#allocation4 + $0xb0] sm:$0xf]
    %v101 = vld [vmem:[#allocation4 + $0xb4] sm:$0xf]
    %v102 = vld [vmem:[#allocation4 + $0xb8] sm:$0xf]
    %v103 = vld [vmem:[#allocation4 + $0xbc] sm:$0xf]
    %v104 = vld [vmem:[#allocation4 + $0xc0] sm:$0xf]
    %v105 = vld [vmem:[#allocation4 + $0xc4] sm:$0xf]
    %v106 = vld [vmem:[#allocation4 + $0xc8] sm:$0xf]
    %v107 = vld [vmem:[#allocation4 + $0xcc] sm:$0xf]
    %v108 = vld [vmem:[#allocation4 + $0xd0] sm:$0xf]
    %v109 = vld [vmem:[#allocation4 + $0xd4] sm:$0xf]
    %v110 = vld [vmem:[#allocation4 + $0xd8] sm:$0xf]
    %v111 = vld [vmem:[#allocation4 + $0xdc] sm:$0xf]
    %v112 = vld [vmem:[#allocation4 + $0xe0] sm:$0xf]
    %v113 = vld [vmem:[#allocation4 + $0xe4] sm:$0xf]
    %v114 = vld [vmem:[#allocation4 + $0xe8] sm:$0xf]
    %v115 = vld [vmem:[#allocation4 + $0xec] sm:$0xf]
    %v116 = vld [vmem:[#allocation4 + $0xf0] sm:$0xf]
    %v117 = vld [vmem:[#allocation4 + $0xf4] sm:$0xf]
    %v118 = vld [vmem:[#allocation4 + $0xf8] sm:$0xf]
    %v119 = vld [vmem:[#allocation4 + $0xfc] sm:$0xf]
    %v120 = vld [vmem:[#allocation4 + $0x100] sm:$0xf]
    %v121 = vld [vmem:[#allocation4 + $0x104] sm:$0xf]
    %v122 = vld [vmem:[#allocation4 + $0x108] sm:$0xf]
    %v123 = vld [vmem:[#allocation4 + $0x10c] sm:$0xf]
    %v124 = vld [vmem:[#allocation4 + $0x110] sm:$0xf]
    %v125 = vld [vmem:[#allocation4 + $0x114] sm:$0xf]
    %v126 = vld [vmem:[#allocation4 + $0x118] sm:$0xf]
    %v127 = vld [vmem:[#allocation4 + $0x11c] sm:$0xf]
    %v128 = vld [vmem:[#allocation4 + $0x120] sm:$0xf]
    %v129 = vld [vmem:[#allocation4 + $0x124] sm:$0xf]
    %v130 = vld [vmem:[#allocation4 + $0x128] sm:$0xf]
    %v131 = vld [vmem:[%s2] sm:$0x1]
    %v133 = vlaneseq
    %v134 = vshrl.u32 %v133, 7
    %v135 = vsub.s32 0, %v134
    %v136 = vrot.slane %v131, %v135
    %v141 = vunpack.c.l.b16 %v53
    %v142 = vunpack.c.h.b16 %v53
    %v143 = vunpack.c.l.b16 %v54
    %v144 = vunpack.c.h.b16 %v54
    %v145 = vunpack.c.l.b16 %v55
    %v146 = vpack.c.b16 %v141, %v141
    %v147 = vpack.c.b16 %v142, %v142
    %v148 = vpack.c.b16 %v143, %v143
    %v149 = vpack.c.b16 %v144, %v144
    %v150 = vpack.c.b16 %v145, %v145
    %v230 = vunpack.c.l.b16 %v56
    %v231 = vunpack.c.l.b16 %v57
    %v232 = vunpack.c.l.b16 %v58
    %v233 = vunpack.c.l.b16 %v59
    %v234 = vunpack.c.l.b16 %v60
    %v235 = vunpack.c.l.b16 %v61
    %v236 = vunpack.c.l.b16 %v62
    %v237 = vunpack.c.l.b16 %v63
    %v238 = vunpack.c.l.b16 %v64
    %v239 = vunpack.c.l.b16 %v65
    %v240 = vunpack.c.l.b16 %v66
    %v241 = vunpack.c.l.b16 %v67
    %v242 = vunpack.c.l.b16 %v68
    %v243 = vunpack.c.l.b16 %v69
    %v244 = vunpack.c.l.b16 %v70
    %v245 = vunpack.c.l.b16 %v71
    %v246 = vunpack.c.l.b16 %v72
    %v247 = vunpack.c.l.b16 %v73
    %v248 = vunpack.c.l.b16 %v74
    %v249 = vunpack.c.l.b16 %v75
    %v250 = vunpack.c.l.b16 %v76
    %v251 = vunpack.c.l.b16 %v77
    %v252 = vunpack.c.l.b16 %v78
    %v253 = vunpack.c.l.b16 %v79
    %v254 = vunpack.c.l.b16 %v80
    %v255 = vunpack.c.l.b16 %v81
    %v256 = vunpack.c.l.b16 %v82
    %v257 = vunpack.c.l.b16 %v83
    %v258 = vunpack.c.l.b16 %v84
    %v259 = vunpack.c.l.b16 %v85
    %v260 = vunpack.c.l.b16 %v86
    %v261 = vunpack.c.l.b16 %v87
    %v262 = vunpack.c.l.b16 %v88
    %v263 = vunpack.c.l.b16 %v89
    %v264 = vunpack.c.l.b16 %v90
    %v265 = vunpack.c.l.b16 %v91
    %v266 = vunpack.c.l.b16 %v92
    %v267 = vunpack.c.l.b16 %v93
    %v268 = vunpack.c.l.b16 %v94
    %v269 = vunpack.c.l.b16 %v95
    %v270 = vunpack.c.l.b16 %v96
    %v271 = vunpack.c.l.b16 %v97
    %v272 = vunpack.c.l.b16 %v98
    %v273 = vunpack.c.l.b16 %v99
    %v274 = vunpack.c.l.b16 %v100
    %v275 = vunpack.c.l.b16 %v101
    %v276 = vunpack.c.l.b16 %v102
    %v277 = vunpack.c.l.b16 %v103
    %v278 = vunpack.c.l.b16 %v104
    %v279 = vunpack.c.l.b16 %v105
    %v280 = vunpack.c.l.b16 %v106
    %v281 = vunpack.c.l.b16 %v107
    %v282 = vunpack.c.l.b16 %v108
    %v283 = vunpack.c.l.b16 %v109
    %v284 = vunpack.c.l.b16 %v110
    %v285 = vunpack.c.l.b16 %v111
    %v286 = vunpack.c.l.b16 %v112
    %v287 = vunpack.c.l.b16 %v113
    %v288 = vunpack.c.l.b16 %v114
    %v289 = vunpack.c.l.b16 %v115
    %v290 = vunpack.c.l.b16 %v116
    %v291 = vunpack.c.l.b16 %v117
    %v292 = vunpack.c.l.b16 %v118
    %v293 = vunpack.c.l.b16 %v119
    %v294 = vunpack.c.l.b16 %v120
    %v295 = vunpack.c.l.b16 %v121
    %v296 = vunpack.c.l.b16 %v122
    %v297 = vunpack.c.l.b16 %v123
    %v298 = vunpack.c.l.b16 %v124
    %v299 = vunpack.c.l.b16 %v125
    %v300 = vunpack.c.l.b16 %v126
    %v301 = vunpack.c.l.b16 %v127
    %v302 = vunpack.c.l.b16 %v128
    %v303 = vunpack.c.l.b16 %v129
    %v304 = vunpack.c.l.b16 %v130
    %v305 = vpack.c.b16 %v231, %v230
    %v306 = vpack.c.b16 %v233, %v232
    %v307 = vpack.c.b16 %v235, %v234
    %v308 = vpack.c.b16 %v237, %v236
    %v309 = vpack.c.b16 %v239, %v238
    %v310 = vpack.c.b16 %v241, %v240
    %v311 = vpack.c.b16 %v243, %v242
    %v312 = vpack.c.b16 %v245, %v244
    %v313 = vpack.c.b16 %v247, %v246
    %v314 = vpack.c.b16 %v249, %v248
    %v315 = vpack.c.b16 %v251, %v250
    %v316 = vpack.c.b16 %v253, %v252
    %v317 = vpack.c.b16 %v255, %v254
    %v318 = vpack.c.b16 %v257, %v256
    %v319 = vpack.c.b16 %v259, %v258
    %v320 = vpack.c.b16 %v261, %v260
    %v321 = vpack.c.b16 %v263, %v262
    %v322 = vpack.c.b16 %v265, %v264
    %v323 = vpack.c.b16 %v267, %v266
    %v324 = vpack.c.b16 %v269, %v268
    %v325 = vpack.c.b16 %v271, %v270
    %v326 = vpack.c.b16 %v273, %v272
    %v327 = vpack.c.b16 %v275, %v274
    %v328 = vpack.c.b16 %v277, %v276
    %v329 = vpack.c.b16 %v279, %v278
    %v330 = vpack.c.b16 %v281, %v280
    %v331 = vpack.c.b16 %v283, %v282
    %v332 = vpack.c.b16 %v285, %v284
    %v333 = vpack.c.b16 %v287, %v286
    %v334 = vpack.c.b16 %v289, %v288
    %v335 = vpack.c.b16 %v291, %v290
    %v336 = vpack.c.b16 %v293, %v292
    %v337 = vpack.c.b16 %v295, %v294
    %v338 = vpack.c.b16 %v297, %v296
    %v339 = vpack.c.b16 %v299, %v298
    %v340 = vpack.c.b16 %v301, %v300
    %v341 = vpack.c.b16 %v303, %v302
    %v342 = vpack.c.b16 %v304, %v304
    %vm380 = vcmask 719872
    %v382 = vsel %vm380, %v150, 0
    %vm384 = vcmask 1043456
    %v386 = vsel %vm384, %v342, 0
    %388 = vmatprep.subr.bf16.mxu0 0
    %389 = vmatpush1.bf16.msra.mxu0 %v312
    %390 = vmatprep.subr.bf16.mxu0 0
    %391 = vmatpush1.bf16.msra.mxu0 %v311
    %392 = vmatprep.subr.bf16.mxu0 0
    %393 = vmatpush1.bf16.msra.mxu0 %v310
    %394 = vmatprep.subr.bf16.mxu0 0
    %395 = vmatpush1.bf16.msra.mxu0 %v309
    %396 = vmatprep.subr.bf16.mxu0 0
    %397 = vmatpush1.bf16.msra.mxu0 %v308
    %398 = vmatprep.subr.bf16.mxu0 0
    %399 = vmatpush1.bf16.msra.mxu0 %v307
    %400 = vmatprep.subr.bf16.mxu0 0
    %401 = vmatpush1.bf16.msra.mxu0 %v306
    %402 = vmatprep.subr.bf16.mxu0 0
    %403 = vmatpush1.bf16.msra.mxu0 %v305
    %404 = vmatprep.subr.bf16.mxu0 0
    %405 = vmatpush2.bf16.msra.mxu0 %v320
    %406 = vmatprep.subr.bf16.mxu0 0
    %407 = vmatpush2.bf16.msra.mxu0 %v319
    %408 = vmatprep.subr.bf16.mxu0 0
    %409 = vmatpush2.bf16.msra.mxu0 %v318
    %410 = vmatprep.subr.bf16.mxu0 0
    %411 = vmatpush2.bf16.msra.mxu0 %v317
    %412 = vmatprep.subr.bf16.mxu0 0
    %413 = vmatpush2.bf16.msra.mxu0 %v316
    %414 = vmatprep.subr.bf16.mxu0 0
    %415 = vmatpush2.bf16.msra.mxu0 %v315
    %416 = vmatprep.subr.bf16.mxu0 0
    %417 = vmatpush2.bf16.msra.mxu0 %v314
    %418 = vmatprep.subr.bf16.mxu0 0
    %419 = vmatpush2.bf16.msra.mxu0 %v313
    %420 = vmatprep.mubr.bf16.mxu0 %v147
    %421 = vmatmul.mubr.bf16.gmra.mxu0 %v146
    %v422 = vpop.f32.mrf.mxu0
    %v423 = vadd.f32 %v136, %v422
    %v424 = vpop.f32.mrf.mxu0
    %v425 = vpop.f32.mrf.mxu0
    %v426 = vpop.f32.mrf.mxu0
    %427 = vdwg.mxu0
    %428 = vmatprep.subr.bf16.mxu0 0
    %429 = vmatpush1.bf16.msra.mxu0 %v328
    %430 = vmatprep.subr.bf16.mxu0 0
    %431 = vmatpush1.bf16.msra.mxu0 %v327
    %432 = vmatprep.subr.bf16.mxu0 0
    %433 = vmatpush1.bf16.msra.mxu0 %v326
    %434 = vmatprep.subr.bf16.mxu0 0
    %435 = vmatpush1.bf16.msra.mxu0 %v325
    %436 = vmatprep.subr.bf16.mxu0 0
    %437 = vmatpush1.bf16.msra.mxu0 %v324
    %438 = vmatprep.subr.bf16.mxu0 0
    %439 = vmatpush1.bf16.msra.mxu0 %v323
    %440 = vmatprep.subr.bf16.mxu0 0
    %441 = vmatpush1.bf16.msra.mxu0 %v322
    %442 = vmatprep.subr.bf16.mxu0 0
    %443 = vmatpush1.bf16.msra.mxu0 %v321
    %444 = vmatprep.subr.bf16.mxu0 0
    %445 = vmatpush2.bf16.msra.mxu0 %v336
    %446 = vmatprep.subr.bf16.mxu0 0
    %447 = vmatpush2.bf16.msra.mxu0 %v335
    %448 = vmatprep.subr.bf16.mxu0 0
    %449 = vmatpush2.bf16.msra.mxu0 %v334
    %450 = vmatprep.subr.bf16.mxu0 0
    %451 = vmatpush2.bf16.msra.mxu0 %v333
    %452 = vmatprep.subr.bf16.mxu0 0
    %453 = vmatpush2.bf16.msra.mxu0 %v332
    %454 = vmatprep.subr.bf16.mxu0 0
    %455 = vmatpush2.bf16.msra.mxu0 %v331
    %456 = vmatprep.subr.bf16.mxu0 0
    %457 = vmatpush2.bf16.msra.mxu0 %v330
    %458 = vmatprep.subr.bf16.mxu0 0
    %459 = vmatpush2.bf16.msra.mxu0 %v329
    %460 = vmatprep.mubr.bf16.mxu0 %v149
    %461 = vmatmul.mubr.bf16.gmra.mxu0 %v148
    %v462 = vpop.f32.mrf.mxu0
    %v463 = vadd.f32 %v423, %v462
    %v464 = vpop.f32.mrf.mxu0
    %v465 = vpop.f32.mrf.mxu0
    %v466 = vpop.f32.mrf.mxu0
    %467 = vdwg.mxu0
    %468 = vmatprep.subr.bf16.mxu0 0
    %469 = vmatpush1.bf16.msra.mxu0 0
    %470 = vmatprep.subr.bf16.mxu0 0
    %471 = vmatpush1.bf16.msra.mxu0 0
    %472 = vmatprep.subr.bf16.mxu0 0
    %473 = vmatpush1.bf16.msra.mxu0 %v386
    %474 = vmatprep.subr.bf16.mxu0 0
    %475 = vmatpush1.bf16.msra.mxu0 %v341
    %476 = vmatprep.subr.bf16.mxu0 0
    %477 = vmatpush1.bf16.msra.mxu0 %v340
    %478 = vmatprep.subr.bf16.mxu0 0
    %479 = vmatpush1.bf16.msra.mxu0 %v339
    %480 = vmatprep.subr.bf16.mxu0 0
    %481 = vmatpush1.bf16.msra.mxu0 %v338
    %482 = vmatprep.subr.bf16.mxu0 0
    %483 = vmatpush1.bf16.msra.mxu0 %v337
    %484 = vmatprep.subr.bf16.mxu0 0
    %485 = vmatpush2.bf16.msra.mxu0 0
    %486 = vmatprep.subr.bf16.mxu0 0
    %487 = vmatpush2.bf16.msra.mxu0 0
    %488 = vmatprep.subr.bf16.mxu0 0
    %489 = vmatpush2.bf16.msra.mxu0 0
    %490 = vmatprep.subr.bf16.mxu0 0
    %491 = vmatpush2.bf16.msra.mxu0 0
    %492 = vmatprep.subr.bf16.mxu0 0
    %493 = vmatpush2.bf16.msra.mxu0 0
    %494 = vmatprep.subr.bf16.mxu0 0
    %495 = vmatpush2.bf16.msra.mxu0 0
    %496 = vmatprep.subr.bf16.mxu0 0
    %497 = vmatpush2.bf16.msra.mxu0 0
    %498 = vmatprep.subr.bf16.mxu0 0
    %499 = vmatpush2.bf16.msra.mxu0 0
    %500 = vmatprep.mubr.bf16.mxu0 0
    %501 = vmatmul.mubr.bf16.gmra.mxu0 %v382
    %v502 = vpop.f32.mrf.mxu0
    %v503 = vadd.f32 %v463, %v502
    %v504 = vpop.f32.mrf.mxu0
    %v505 = vpop.f32.mrf.mxu0
    %v506 = vpop.f32.mrf.mxu0
    %507 = vdwg.mxu0
    %v508 = vmax.f32 %v503, 0.0
    %v509 = vpack.c.bf16 %v508, %v508
    %v510 = vld [vmem:[%s3] sm:$0xf]
    %v511 = vld [vmem:[%s3 + $0x4] sm:$0xf]
    %v512 = vld [vmem:[%s3 + $0x8] sm:$0xf]
    %v513 = vld [vmem:[%s3 + $0xc] sm:$0xf]
    %v514 = vld [vmem:[%s3 + $0x10] sm:$0xf]
    %v515 = vld [vmem:[%s3 + $0x14] sm:$0xf]
    %v516 = vld [vmem:[%s3 + $0x18] sm:$0xf]
    %v517 = vld [vmem:[%s3 + $0x1c] sm:$0xf]
    %v518 = vld [vmem:[%s3 + $0x20] sm:$0xf]
    %v519 = vld [vmem:[%s3 + $0x24] sm:$0xf]
    %v520 = vld [vmem:[%s3 + $0x28] sm:$0xf]
    %v521 = vld [vmem:[%s3 + $0x2c] sm:$0xf]
    %v522 = vld [vmem:[%s3 + $0x30] sm:$0xf]
    %v523 = vld [vmem:[%s3 + $0x34] sm:$0xf]
    %v524 = vld [vmem:[%s3 + $0x38] sm:$0xf]
    %v525 = vld [vmem:[%s3 + $0x3c] sm:$0xf]
    %v526 = vld [vmem:[%s4] sm:$0x1]
    %v528 = vlaneseq
    %v529 = vshrl.u32 %v528, 7
    %v530 = vsub.s32 0, %v529
    %v531 = vrot.slane %v526, %v530
    %v549 = vunpack.c.l.b16 %v510
    %v550 = vunpack.c.l.b16 %v511
    %v551 = vunpack.c.l.b16 %v512
    %v552 = vunpack.c.l.b16 %v513
    %v553 = vunpack.c.l.b16 %v514
    %v554 = vunpack.c.l.b16 %v515
    %v555 = vunpack.c.l.b16 %v516
    %v556 = vunpack.c.l.b16 %v517
    %v557 = vunpack.c.l.b16 %v518
    %v558 = vunpack.c.l.b16 %v519
    %v559 = vunpack.c.l.b16 %v520
    %v560 = vunpack.c.l.b16 %v521
    %v561 = vunpack.c.l.b16 %v522
    %v562 = vunpack.c.l.b16 %v523
    %v563 = vunpack.c.l.b16 %v524
    %v564 = vunpack.c.l.b16 %v525
    %v565 = vpack.c.b16 %v550, %v549
    %v566 = vpack.c.b16 %v552, %v551
    %v567 = vpack.c.b16 %v554, %v553
    %v568 = vpack.c.b16 %v556, %v555
    %v569 = vpack.c.b16 %v558, %v557
    %v570 = vpack.c.b16 %v560, %v559
    %v571 = vpack.c.b16 %v562, %v561
    %v572 = vpack.c.b16 %v564, %v563
    %581 = vmatprep.subr.bf16.mxu0 0
    %582 = vmatpush1.bf16.msra.mxu0 %v572
    %583 = vmatprep.subr.bf16.mxu0 0
    %584 = vmatpush1.bf16.msra.mxu0 %v571
    %585 = vmatprep.subr.bf16.mxu0 0
    %586 = vmatpush1.bf16.msra.mxu0 %v570
    %587 = vmatprep.subr.bf16.mxu0 0
    %588 = vmatpush1.bf16.msra.mxu0 %v569
    %589 = vmatprep.subr.bf16.mxu0 0
    %590 = vmatpush1.bf16.msra.mxu0 %v568
    %591 = vmatprep.subr.bf16.mxu0 0
    %592 = vmatpush1.bf16.msra.mxu0 %v567
    %593 = vmatprep.subr.bf16.mxu0 0
    %594 = vmatpush1.bf16.msra.mxu0 %v566
    %595 = vmatprep.subr.bf16.mxu0 0
    %596 = vmatpush1.bf16.msra.mxu0 %v565
    %597 = vmatprep.subr.bf16.mxu0 0
    %598 = vmatpush2.bf16.msra.mxu0 0
    %599 = vmatprep.subr.bf16.mxu0 0
    %600 = vmatpush2.bf16.msra.mxu0 0
    %601 = vmatprep.subr.bf16.mxu0 0
    %602 = vmatpush2.bf16.msra.mxu0 0
    %603 = vmatprep.subr.bf16.mxu0 0
    %604 = vmatpush2.bf16.msra.mxu0 0
    %605 = vmatprep.subr.bf16.mxu0 0
    %606 = vmatpush2.bf16.msra.mxu0 0
    %607 = vmatprep.subr.bf16.mxu0 0
    %608 = vmatpush2.bf16.msra.mxu0 0
    %609 = vmatprep.subr.bf16.mxu0 0
    %610 = vmatpush2.bf16.msra.mxu0 0
    %611 = vmatprep.subr.bf16.mxu0 0
    %612 = vmatpush2.bf16.msra.mxu0 0
    %613 = vmatprep.mubr.bf16.mxu0 0
    %614 = vmatmul.mubr.bf16.gmra.mxu0 %v509
    %v615 = vpop.f32.mrf.mxu0
    %v616 = vadd.f32 %v531, %v615
    %v617 = vpop.f32.mrf.mxu0
    %v618 = vpop.f32.mrf.mxu0
    %v619 = vpop.f32.mrf.mxu0
    %620 = vdwg.mxu0
    %v621 = vmax.f32 %v616, 0.0
    %v622 = vpack.c.bf16 %v621, %v621
    %v623 = vld [vmem:[%s5] sm:$0xf]
    %v624 = vld [vmem:[%s5 + $0x4] sm:$0xf]
    %v625 = vld [vmem:[%s5 + $0x8] sm:$0xf]
    %v626 = vld [vmem:[%s5 + $0xc] sm:$0xf]
    %v627 = vld [vmem:[%s5 + $0x10] sm:$0xf]
    %v628 = vld [vmem:[%s5 + $0x14] sm:$0xf]
    %v629 = vld [vmem:[%s5 + $0x18] sm:$0xf]
    %v630 = vld [vmem:[%s5 + $0x1c] sm:$0xf]
    %v631 = vld [vmem:[%s5 + $0x20] sm:$0xf]
    %v632 = vld [vmem:[%s5 + $0x24] sm:$0xf]
    %v633 = vld [vmem:[%s5 + $0x28] sm:$0xf]
    %v634 = vld [vmem:[%s5 + $0x2c] sm:$0xf]
    %v635 = vld [vmem:[%s5 + $0x30] sm:$0xf]
    %v636 = vld [vmem:[%s5 + $0x34] sm:$0xf]
    %v637 = vld [vmem:[%s5 + $0x38] sm:$0xf]
    %v638 = vld [vmem:[%s5 + $0x3c] sm:$0xf]
    %v639 = vld [vmem:[%s6] sm:$0x1]
    %v641 = vlaneseq
    %v642 = vshrl.u32 %v641, 7
    %v643 = vsub.s32 0, %v642
    %v644 = vrot.slane %v639, %v643
    %v662 = vunpack.c.l.b16 %v623
    %v663 = vunpack.c.l.b16 %v624
    %v664 = vunpack.c.l.b16 %v625
    %v665 = vunpack.c.l.b16 %v626
    %v666 = vunpack.c.l.b16 %v627
    %v667 = vunpack.c.l.b16 %v628
    %v668 = vunpack.c.l.b16 %v629
    %v669 = vunpack.c.l.b16 %v630
    %v670 = vunpack.c.l.b16 %v631
    %v671 = vunpack.c.l.b16 %v632
    %v672 = vunpack.c.l.b16 %v633
    %v673 = vunpack.c.l.b16 %v634
    %v674 = vunpack.c.l.b16 %v635
    %v675 = vunpack.c.l.b16 %v636
    %v676 = vunpack.c.l.b16 %v637
    %v677 = vunpack.c.l.b16 %v638
    %v678 = vpack.c.b16 %v663, %v662
    %v679 = vpack.c.b16 %v665, %v664
    %v680 = vpack.c.b16 %v667, %v666
    %v681 = vpack.c.b16 %v669, %v668
    %v682 = vpack.c.b16 %v671, %v670
    %v683 = vpack.c.b16 %v673, %v672
    %v684 = vpack.c.b16 %v675, %v674
    %v685 = vpack.c.b16 %v677, %v676
    %694 = vmatprep.subr.bf16.mxu0 0
    %695 = vmatpush1.bf16.msra.mxu0 %v685
    %696 = vmatprep.subr.bf16.mxu0 0
    %697 = vmatpush1.bf16.msra.mxu0 %v684
    %698 = vmatprep.subr.bf16.mxu0 0
    %699 = vmatpush1.bf16.msra.mxu0 %v683
    %700 = vmatprep.subr.bf16.mxu0 0
    %701 = vmatpush1.bf16.msra.mxu0 %v682
    %702 = vmatprep.subr.bf16.mxu0 0
    %703 = vmatpush1.bf16.msra.mxu0 %v681
    %704 = vmatprep.subr.bf16.mxu0 0
    %705 = vmatpush1.bf16.msra.mxu0 %v680
    %706 = vmatprep.subr.bf16.mxu0 0
    %707 = vmatpush1.bf16.msra.mxu0 %v679
    %708 = vmatprep.subr.bf16.mxu0 0
    %709 = vmatpush1.bf16.msra.mxu0 %v678
    %710 = vmatprep.subr.bf16.mxu0 0
    %711 = vmatpush2.bf16.msra.mxu0 0
    %712 = vmatprep.subr.bf16.mxu0 0
    %713 = vmatpush2.bf16.msra.mxu0 0
    %714 = vmatprep.subr.bf16.mxu0 0
    %715 = vmatpush2.bf16.msra.mxu0 0
    %716 = vmatprep.subr.bf16.mxu0 0
    %717 = vmatpush2.bf16.msra.mxu0 0
    %718 = vmatprep.subr.bf16.mxu0 0
    %719 = vmatpush2.bf16.msra.mxu0 0
    %720 = vmatprep.subr.bf16.mxu0 0
    %721 = vmatpush2.bf16.msra.mxu0 0
    %722 = vmatprep.subr.bf16.mxu0 0
    %723 = vmatpush2.bf16.msra.mxu0 0
    %724 = vmatprep.subr.bf16.mxu0 0
    %725 = vmatpush2.bf16.msra.mxu0 0
    %726 = vmatprep.mubr.bf16.mxu0 0
    %727 = vmatmul.mubr.bf16.gmra.mxu0 %v622
    %v728 = vpop.f32.mrf.mxu0
    %v729 = vadd.f32 %v644, %v728
    %v730 = vpop.f32.mrf.mxu0
    %v731 = vpop.f32.mrf.mxu0
    %v732 = vpop.f32.mrf.mxu0
    %733 = vdwg.mxu0
    %vm734 = vcmask 15360
    %735 = vst.msk [vmem:[%s7] sm:$0xff] %vm734, %v729
    // Predicated region
    $region38: #{classification_net_forward.1} parent=1 // pred_check
      _
    $region39: #{classification_net_forward.1} parent=1 // pred_check_branch
      %737 = sbr.rel (0) target = $region41
    $region40: #{classification_net_forward.1} parent=1 // pred_region
      _
    $region41: #{classification_net_forward.1} parent=1 // pred_fallthru
      _
    // Predicated region
    $region42: #{classification_net_forward.1} parent=1 // pred_check
      _
    $region43: #{classification_net_forward.1} parent=1 // pred_check_branch
      %739 = sbr.rel (0) target = $region45
    $region44: #{classification_net_forward.1} parent=1 // pred_region
      _
    $region45: #{classification_net_forward.1} parent=1 // pred_fallthru
      _
    %740 = vsyncpa [#allocation3], 1
    %741 = vsyncpa [#allocation5], 1

</llo_original>
